<compile_context>
chip_gen: v6e
topology: v6e:2x2x1
jax: 0.10.0
libtpu: 0.0.40
codegen_flags: <defaults>
</compile_context>

<pallas_src>
import functools
import math

import numpy as np
import jax
import jax.numpy as jnp
from jax.experimental import pallas as pl
from jax.experimental.pallas import tpu as pltpu


def _round_up(x, m):
    return ((x + m - 1) // m) * m


# --------------------------------------------------------------------------
# Pallas kernel: multi-hot x block-diagonal-table matmul  (+ optional L2 norm)
# --------------------------------------------------------------------------
def _feature_embedding_kernel(idx_ref, w_ref, o_ref, *, num_features, normalize,
                              dot_dtype):
    # idx_ref : (TN, F)      int32      -- indices shifted by per-feature vocab offsets
    # w_ref   : (Vpad, TD)   dot_dtype  -- block-diagonal combined table slice (zero-padded)
    # o_ref   : (TN, TD)     f32
    idx = idx_ref[...]
    vpad = w_ref.shape[0]

    # (1, Vpad) iota; the compares broadcast it along sublanes (essentially free)
    # instead of materializing a (TN, Vpad) int32 iota.
    lane_iota = jax.lax.broadcasted_iota(jnp.int32, (1, vpad), 1)

    # Multi-hot indicator: one "1" per feature per row.  Feature vocab ranges
    # are disjoint, so boolean OR of the per-feature compares equals the sum of
    # one-hots; cast to the matmul dtype once at the end.
    hit = idx[:, 0:1] == lane_iota
    for f in range(1, num_features):
        hit = jnp.logical_or(hit, idx[:, f:f + 1] == lane_iota)
    indicator = hit.astype(dot_dtype)

    # Fused "F lookups + concat" == indicator @ block-diagonal W.
    emb = jnp.dot(indicator, w_ref[...], preferred_element_type=jnp.float32)

    if normalize:
        # torch F.normalize(p=2, dim=1): x / max(||x||_2, eps), eps = 1e-12.
        # rsqrt executes on the EUP slot; clamping the squared sum at eps**2
        # preserves the torch epsilon semantics.  Padded output columns are
        # zero, so they never perturb the sum.
        sumsq = jnp.sum(emb * emb, axis=-1, keepdims=True)
        emb = emb * jax.lax.rsqrt(jnp.maximum(sumsq, 1e-24))

    o_ref[...] = emb.astype(o_ref.dtype)


# --------------------------------------------------------------------------
# Wrapper: tiling / padding / pallas_call
# --------------------------------------------------------------------------
def feature_embedding_forward(shifted_indices, w_combined, *, normalize=False,
                              dot_dtype=jnp.float32, tile_n=None,
                              vmem_budget_bytes=12 << 20):
    """shifted_indices: (N, F) int32 ; w_combined: (Vtot, Dtot) f32 -> (N, Dtot) f32.

    dot_dtype=jnp.bfloat16 enables the fast bf16 MXU path on v6e/v7x (indicator
    is exact in bf16; W entries are bf16-rounded, so no bit-parity with f32).
    """
    n, f = shifted_indices.shape
    vtot, dtot = w_combined.shape
    w_item = jnp.dtype(dot_dtype).itemsize

    # Lane-dense padding at 128 granularity (also on v6e/v7x).
    v_pad = _round_up(max(vtot, 8), 128)
    d_pad = _round_up(max(dtot, 1), 128)

    # Batch tile: large enough to amortize per-step pipeline overhead, capped so
    # the grid keeps >= 2 steps for megacore (2 TCs on v7x) when N allows it.
    if tile_n is None:
        tile_n = 512
    tile_n = max(128, _round_up(tile_n, 128))
    n_pad128 = _round_up(max(n, 1), 128)
    if n_pad128 >= 256:
        tile_n = min(tile_n, max(128, ((n_pad128 // 2) // 128) * 128))
    else:
        tile_n = 128

    tile_d = d_pad

    def _vmem_bytes(tn, td):
        return (tn * v_pad * w_item          # indicator temp
                + 2 * tn * f * 4             # idx tile (double-buffered)
                + 2 * tn * td * 4            # out tile (double-buffered)
                + 2 * v_pad * td * w_item)   # W block (double-buffered)

    # Shrink whichever term dominates; never go below 128 in either direction.
    while _vmem_bytes(tile_n, tile_d) > vmem_budget_bytes:
        w_term = 2 * v_pad * tile_d * w_item
        n_term = tile_n * (v_pad * w_item + 2 * f * 4 + 2 * tile_d * 4)
        if (not normalize) and tile_d > 128 and (w_term >= n_term or tile_n <= 128):
            tile_d = _round_up(max(128, tile_d // 2), 128)
        elif tile_n > 128:
            tile_n //= 2
        else:
            break  # fall back to a raised vmem limit below

    d_pad = _round_up(d_pad, tile_d)
    n_pad = _round_up(max(n, 1), tile_n)
    grid = (n_pad // tile_n, d_pad // tile_d)

    est = _vmem_bytes(tile_n, tile_d)
    vmem_limit = int(min(est + (4 << 20), 96 << 20)) if est > vmem_budget_bytes else None

    # Zero padding.  Padded batch rows carry all-zero indices, so their
    # indicator is a single 1 at column 0 and the padded output rows equal
    # W[0, :]; they are sliced off below and must never be reused as-is.
    idx_p = jnp.zeros((n_pad, f), jnp.int32).at[:n, :].set(shifted_indices)
    w_p = (jnp.zeros((v_pad, d_pad), jnp.float32)
           .at[:vtot, :dtot].set(w_combined)
           .astype(dot_dtype))

    # L2 norm needs the full Dtot in one block; with the policy above tile_d ==
    # d_pad whenever normalize=True, but keep a safe JAX-side fallback anyway.
    normalize_in_kernel = normalize and (tile_d == d_pad)

    kernel = functools.partial(
        _feature_embedding_kernel,
        num_features=f,
        normalize=normalize_in_kernel,
        dot_dtype=dot_dtype,
    )

    out = pl.pallas_call(
        kernel,
        out_shape=jax.ShapeDtypeStruct((n_pad, d_pad), jnp.float32),
        grid=grid,
        in_specs=[
            pl.BlockSpec((tile_n, f), lambda i, j: (i, 0)),
            # Resident W slice: constant along the batch axis, tiled along D.
            pl.BlockSpec((v_pad, tile_d), lambda i, j: (0, j)),
        ],
        out_specs=pl.BlockSpec((tile_n, tile_d), lambda i, j: (i, j)),
        compiler_params=pltpu.CompilerParams(
            # Batch and D tiles are independent -> megacore split, no reduction axis.
            dimension_semantics=("parallel", "parallel"),
            vmem_limit_bytes=vmem_limit,
        ),
        cost_estimate=pl.CostEstimate(
            flops=2 * n_pad * v_pad * d_pad,
            transcendentals=n_pad if normalize_in_kernel else 0,
            bytes_accessed=(grid[1] * n_pad * f * 4
                            + grid[0] * v_pad * d_pad * w_item
                            + n_pad * d_pad * 4),
        ),
    )(idx_p, w_p)

    out = out[:n, :dtot]
    if normalize and not normalize_in_kernel:
        out = out * jax.lax.rsqrt(
            jnp.maximum(jnp.sum(out * out, axis=-1, keepdims=True), 1e-24))
    return out


# --------------------------------------------------------------------------
# Parameter / index construction glue (plain JAX / numpy; matches the module)
# --------------------------------------------------------------------------
def xavier_uniform(key, num_rows, num_cols):
    # matches nn.init.xavier_uniform_ on a (num_embeddings, embedding_dim) table
    bound = math.sqrt(6.0 / (num_rows + num_cols))
    return jax.random.uniform(key, (num_rows, num_cols), jnp.float32, -bound, bound)


def build_combined_table(key, n_vocab_list, embedding_dims):
    """Block-diagonal table: feature i lives at rows voff[i]:, cols doff[i]:."""
    vtot = int(sum(n_vocab_list))
    dtot = int(sum(embedding_dims))
    w = jnp.zeros((vtot, dtot), jnp.float32)
    tables = []
    voff, doff = 0, 0
    keys = jax.random.split(key, len(n_vocab_list))
    for k, v, d in zip(keys, n_vocab_list, embedding_dims):
        t = xavier_uniform(k, v, d)
        tables.append(t)
        w = w.at[voff:voff + v, doff:doff + d].set(t)
        voff += v
        doff += d
    return w, tables


def sentences_to_shifted_indices(index_sentences, vocab_list):
    """String tokens -> int indices, shifted by cumulative vocab offsets (host-side)."""
    vocab_maps = [dict(zip(v, range(len(v)))) for v in vocab_list]
    offsets = np.cumsum([0] + [len(v) for v in vocab_list[:-1]])
    n, f = index_sentences.shape
    idx = np.zeros((n, f), dtype=np.int32)
    for j in range(f):
        for i in range(n):
            idx[i, j] = vocab_maps[j][index_sentences[i, j]] + offsets[j]
    return jnp.asarray(idx)


# --------------------------------------------------------------------------
# Demo / self-check
# --------------------------------------------------------------------------
if __name__ == "__main__":
    key = jax.random.PRNGKey(0)
    wkey, ikey = jax.random.split(key)

    # Small FeatureEmbedding config: 3 categorical features.
    vocab_list = [
        ["a", "b", "c", "d", "e"],               # V0 = 5
        ["p", "q", "r", "s", "t", "u", "v"],     # V1 = 7
        ["x", "y", "z", "w"],                    # V2 = 4
    ]
    embedding_dims = [8, 16, 8]                  # Dtot = 32
    n_vocab_list = [len(v) for v in vocab_list]

    # Deterministic "sentences": N rows of F string tokens.
    N = 300                                      # non-multiple of the tile -> exercises padding
    ikeys = jax.random.split(ikey, len(vocab_list))
    raw_idx = np.stack(
        [np.asarray(jax.random.randint(k, (N,), 0, len(v)))
         for k, v in zip(ikeys, vocab_list)],
        axis=-1,
    )
    index_sentences = np.stack(
        [np.array(vocab_list[j], dtype=object)[raw_idx[:, j]] for j in range(len(vocab_list))],
        axis=-1,
    )  # (N, 3) of strings

    # Parameters and shifted indices.
    w_combined, tables = build_combined_table(wkey, n_vocab_list, embedding_dims)
    shifted_idx = sentences_to_shifted_indices(index_sentences, vocab_list)

    # Run the Pallas kernel (normalization=None path, f32 operands).
    out = jax.block_until_ready(
        feature_embedding_forward(shifted_idx, w_combined, normalize=False)
    )

    # Reference in plain JAX: per-feature gather + concat.
    offsets = np.cumsum([0] + n_vocab_list[:-1])
    per_feat = [
        jnp.take(tables[i], shifted_idx[:, i] - int(offsets[i]), axis=0)
        for i in range(len(tables))
    ]
    ref = jnp.concatenate(per_feat, axis=-1)
    assert out.shape == (N, sum(embedding_dims))
    np.testing.assert_allclose(np.asarray(out), np.asarray(ref), rtol=1e-4, atol=1e-5)

    # l2-normalized variant (MultiEmbedding(normalization='l2')).
    out_l2 = jax.block_until_ready(
        feature_embedding_forward(shifted_idx, w_combined, normalize=True)
    )
    ref_l2 = ref / jnp.maximum(
        jnp.sqrt(jnp.sum(ref * ref, axis=-1, keepdims=True)), 1e-12
    )
    np.testing.assert_allclose(np.asarray(out_l2), np.asarray(ref_l2), rtol=1e-4, atol=1e-5)

    # bf16-operand fast-MXU path (indicator exact; W bf16-rounded -> loose tol).
    out_bf16 = jax.block_until_ready(
        feature_embedding_forward(shifted_idx, w_combined, normalize=False,
                                  dot_dtype=jnp.bfloat16)
    )
    np.testing.assert_allclose(np.asarray(out_bf16), np.asarray(ref), rtol=2e-2, atol=2e-2)

    print("KERNEL_OK")
</pallas_src>

<mosaic_0001>
module attributes {stable_mosaic.version = 11 : i64} {
  func.func @_feature_embedding_kernel(%arg0: i32, %arg1: i32, %arg2: memref<128x3xi32, #tpu.memory_space<vmem>>, %arg3: memref<128x128xf32, #tpu.memory_space<vmem>>, %arg4: memref<128x128xf32, #tpu.memory_space<vmem>>) attributes {dimension_semantics = [#tpu.dimension_semantics<parallel>, #tpu.dimension_semantics<parallel>], iteration_bounds = array<i64: 3, 1>, scalar_prefetch = 0 : i64, scratch_operands = 0 : i64, tpu.core_type = #tpu.core_type<tc>, window_params = [{transform_indices = @transform_0, window_bounds = array<i64: 128, 3>}, {transform_indices = @transform_1, window_bounds = array<i64: 128, 128>}, {transform_indices = @transform_2, window_bounds = array<i64: 128, 128>}]} {
    %c0 = arith.constant 0 : index
    %c0_0 = arith.constant 0 : index
    %0 = vector.load %arg2[%c0, %c0_0] : memref<128x3xi32, #tpu.memory_space<vmem>>, vector<128x3xi32>
    %1 = tpu.iota {dimensions = array<i32: 1>} : vector<1x128xi32>
    %2 = vector.extract_strided_slice %0 {offsets = [0, 0], sizes = [128, 1], strides = [1, 1]} : vector<128x3xi32> to vector<128x1xi32>
    %3 = vector.broadcast %2 : vector<128x1xi32> to vector<128x128xi32>
    %4 = vector.broadcast %1 : vector<1x128xi32> to vector<128x128xi32>
    %5 = arith.cmpi eq, %3, %4 : vector<128x128xi32>
    %6 = vector.extract_strided_slice %0 {offsets = [0, 1], sizes = [128, 1], strides = [1, 1]} : vector<128x3xi32> to vector<128x1xi32>
    %7 = vector.broadcast %6 : vector<128x1xi32> to vector<128x128xi32>
    %8 = vector.broadcast %1 : vector<1x128xi32> to vector<128x128xi32>
    %9 = arith.cmpi eq, %7, %8 : vector<128x128xi32>
    %10 = arith.ori %5, %9 : vector<128x128xi1>
    %11 = vector.extract_strided_slice %0 {offsets = [0, 2], sizes = [128, 1], strides = [1, 1]} : vector<128x3xi32> to vector<128x1xi32>
    %12 = vector.broadcast %11 : vector<128x1xi32> to vector<128x128xi32>
    %13 = vector.broadcast %1 : vector<1x128xi32> to vector<128x128xi32>
    %14 = arith.cmpi eq, %12, %13 : vector<128x128xi32>
    %15 = arith.ori %10, %14 : vector<128x128xi1>
    %16 = arith.extui %15 : vector<128x128xi1> to vector<128x128xi32>
    %17 = arith.sitofp %16 : vector<128x128xi32> to vector<128x128xf32>
    %c0_1 = arith.constant 0 : index
    %c0_2 = arith.constant 0 : index
    %18 = vector.load %arg3[%c0_1, %c0_2] : memref<128x128xf32, #tpu.memory_space<vmem>>, vector<128x128xf32>
    %cst = arith.constant dense<0.000000e+00> : vector<128x128xf32>
    %19 = tpu.matmul %17, %18, %cst {dimension_numbers = #tpu.dot_dimension_numbers<[1], [0], [0], [1], [0, 0, 1, 1], [], []>} : vector<128x128xf32>, vector<128x128xf32>, vector<128x128xf32> -> vector<128x128xf32>
    %c0_3 = arith.constant 0 : index
    %c0_4 = arith.constant 0 : index
    %20 = vector.load %arg4[%c0_3, %c0_4] : memref<128x128xf32, #tpu.memory_space<vmem>>, vector<128x128xf32>
    tpu.vector_store %arg4[%c0_3, %c0_4], %19 {strides = array<i32>} : memref<128x128xf32, #tpu.memory_space<vmem>>, vector<128x128xf32>,
    return
  }
  func.func @transform_0(%arg0: i32, %arg1: i32) -> (i32, i32) {
    %c0_i32 = arith.constant 0 : i32
    %c0_i32_0 = arith.constant 0 : i32
    return %arg0, %c0_i32 : i32, i32
  }
  func.func @transform_1(%arg0: i32, %arg1: i32) -> (i32, i32) {
    %c0_i32 = arith.constant 0 : i32
    %c0_i32_0 = arith.constant 0 : i32
    return %c0_i32, %arg1 : i32, i32
  }
  func.func @transform_2(%arg0: i32, %arg1: i32) -> (i32, i32) {
    %c0_i32 = arith.constant 0 : i32
    return %arg0, %arg1 : i32, i32
  }
}

</mosaic_0001>

<llo_original>
// kernel: tpu_custom_call.1
$region0: #{tpu_custom_call.1}
  #allocation0 [shape = 'u32[]', space=smem, size = 0x4, offset = 0x4, fixed_abs, tag = 'smem constant byte address 0x4 - core index']
  #allocation1 [shape = 'u32[144,128]{1,0:T(1,128)}', space=vmem, size = 0x12000, scoped, tag = 'internal scratch']
  %s0 = inlined_call_operand.vmem [shape: s32[384,3], index: 0, kind: input, shape index: {}]
  %s1 = inlined_call_operand.vmem [shape: f32[128,128], index: 1, kind: input, shape index: {}]
  %s2 = inlined_call_operand.hbm [shape: f32[384,128], index: 2, kind: output, shape index: {}]
  %s3 = sld [smem:[#allocation0]]
  $region41: #{tpu_custom_call.1} parent=0
    _
  %s5 = ssub.s32 1, %s3
  %s6 = scalar_select 0, %s5, %s3
  $region1: #{tpu_custom_call.1} parent=0
    #allocation2 [shape = 'u8[131072]{0}', space=vmem, size = 0x20000, scoped, tag = 'output window, operand 0']
    #allocation3 [shape = 's32[2]{0}', space=sflag, size = 0x8, scoped, tag = 'scoped memory for tpu_custom_call.1']
    %7 = vsyncpa [#allocation3], 0
    %s8 = scalar_lea.sflag [#allocation3], 1
    %9 = vsyncpa %s8, 0
    loop: start=0, step=1, limit=5
    $region2: #{tpu_custom_call.1} parent=1 // loop_pre_header
      _
    $region3: #{tpu_custom_call.1} parent=1 // loop_header
      %s11 = sphi 0, %s15
      %p12 = scmp.ge.s32.totalorder %s11, 5
      %s18 = sphi 0, %s30
      %s19 = sphi 0, %s26
      %s20 = sphi 0, %s18
      %s21 = sphi 0, %s19
      %s22 = sphi 0, %s20
      %s23 = sphi 0, %s21
      %s33 = sphi 0, %s35
      %s36 = sphi 0, %s33
      %s37 = sphi 0, %s36
      %s53 = sphi 0, %s37
      %s59 = sphi 0, %s61
      %s62 = sphi 0, %s59
      %s63 = sphi 0, %s62
      %s79 = sphi 0, %s63
      %s87 = sphi 0, %s89
      %s90 = sphi 0, %s87
      %s91 = sphi 0, %s90
      %s107 = sphi 0, %s91
    $region4: #{tpu_custom_call.1} parent=1 // loop_header_branch
      %14 = sbr.rel (%p12) target = $region8
    $region5: #{tpu_custom_call.1} parent=1 // loop_body
      %s16 = ssub.s32 %s11, 1
      %s17 = ssub.s32 %s11, 2
      %s24 = sadd.s32 1, %s19
      %p25 = scmp.ge.s32.totalorder %s24, 1
      %s26 = scalar_select %p25, 0, %s24
      %s27 = sadd.s32 1, %s18
      %s28 = scalar_select %p25, %s27, %s18
      %p29 = scmp.ge.s32.totalorder %s28, 3
      %s30 = scalar_select %p29, 0, %s28
      %s31 = ssub.s32 %s18, %s30
      %p32 = scmp.eq.s32.totalorder %s31, 0
      %s34 = sadd.s32 %s33, 1
      %s35 = scalar_select %p32, %s33, %s34
      %p38 = pneg %p32
      %p39 = scmp.eq.s32.totalorder %s11, 2
      %p40 = por %p38, %p39
      %p41 = scmp.ne.s32.totalorder %s33, %s36
      %p42 = scmp.eq.s32.totalorder %s11, 0
      %p43 = por %p41, %p42
      %p44 = scmp.ne.s32.totalorder %s33, %s36
      %p45 = scmp.eq.s32.totalorder %s16, 2
      %p46 = por %p44, %p45
      %p47 = scmp.ne.s32.totalorder %s36, %s37
      %p48 = scmp.eq.s32.totalorder %s16, 0
      %p49 = por %p47, %p48
      %p50 = scmp.ne.s32.totalorder %s36, %s37
      %p51 = scmp.eq.s32.totalorder %s17, 2
      %p52 = por %p50, %p51
      %p54 = scmp.ne.s32.totalorder %s37, %s53
      %p55 = scmp.eq.s32.totalorder %s17, 0
      %p56 = por %p54, %p55
      %s57 = ssub.s32 %s19, %s26
      %p58 = scmp.eq.s32.totalorder %s57, 0
      %s60 = sadd.s32 %s59, 1
      %s61 = scalar_select %p58, %s59, %s60
      %p64 = pneg %p58
      %p65 = scmp.eq.s32.totalorder %s11, 2
      %p66 = por %p64, %p65
      %p67 = scmp.ne.s32.totalorder %s59, %s62
      %p68 = scmp.eq.s32.totalorder %s11, 0
      %p69 = por %p67, %p68
      %p70 = scmp.ne.s32.totalorder %s59, %s62
      %p71 = scmp.eq.s32.totalorder %s16, 2
      %p72 = por %p70, %p71
      %p73 = scmp.ne.s32.totalorder %s62, %s63
      %p74 = scmp.eq.s32.totalorder %s16, 0
      %p75 = por %p73, %p74
      %p76 = scmp.ne.s32.totalorder %s62, %s63
      %p77 = scmp.eq.s32.totalorder %s17, 2
      %p78 = por %p76, %p77
      %p80 = scmp.ne.s32.totalorder %s63, %s79
      %p81 = scmp.eq.s32.totalorder %s17, 0
      %p82 = por %p80, %p81
      %s83 = ssub.s32 %s18, %s30
      %s84 = ssub.s32 %s19, %s26
      %s85 = sor.u32 %s83, %s84
      %p86 = scmp.eq.s32.totalorder %s85, 0
      %s88 = sadd.s32 %s87, 1
      %s89 = scalar_select %p86, %s87, %s88
      %p92 = pneg %p86
      %p93 = scmp.eq.s32.totalorder %s11, 2
      %p94 = por %p92, %p93
      %p95 = scmp.ne.s32.totalorder %s87, %s90
      %p96 = scmp.eq.s32.totalorder %s11, 0
      %p97 = por %p95, %p96
      %p98 = scmp.ne.s32.totalorder %s87, %s90
      %p99 = scmp.eq.s32.totalorder %s16, 2
      %p100 = por %p98, %p99
      %p101 = scmp.ne.s32.totalorder %s90, %s91
      %p102 = scmp.eq.s32.totalorder %s16, 0
      %p103 = por %p101, %p102
      %p104 = scmp.ne.s32.totalorder %s90, %s91
      %p105 = scmp.eq.s32.totalorder %s17, 2
      %p106 = por %p104, %p105
      %p108 = scmp.ne.s32.totalorder %s91, %s107
      %p109 = scmp.eq.s32.totalorder %s17, 0
      %p110 = por %p108, %p109
      %p111 = scmp.le.s32.totalorder 1, %s11
      %p112 = scmp.lt.s32.totalorder %s11, 4
      %p113 = pnand %p111, %p112
      %p114 = pneg %p113
      // Predicated region
      $region9: #{tpu_custom_call.1} parent=5 // pred_check
        _
      $region10: #{tpu_custom_call.1} parent=5 // pred_check_branch
        %116 = sbr.rel (%p113) target = $region12
      $region11: #{tpu_custom_call.1} parent=5 // pred_region
        %s117 = ssub.s32 %s11, 1
        // Predicated region
        $region13: #{tpu_custom_call.1} parent=11 // pred_check
          %p118 = pneg %p75
        $region14: #{tpu_custom_call.1} parent=11 // pred_check_branch
          %120 = sbr.rel (%p118) target = $region16
        $region15: #{tpu_custom_call.1} parent=11 // pred_region
          %p121 = scmp.lt.s32.totalorder %s21, 0
          %s122 = scalar_select %p121, %s21, 0
          %s123 = smul.addr %s122, 8
          %s124 = scalar_lea.vmem %s1, %s123
        $region16: #{tpu_custom_call.1} parent=11 // pred_fallthru
          _
      $region12: #{tpu_custom_call.1} parent=5 // pred_fallthru
        _
      %p125 = scmp.lt.s32.totalorder %s11, 3
      // Predicated region
      $region17: #{tpu_custom_call.1} parent=5 // pred_check
        %p126 = pneg %p125
      $region18: #{tpu_custom_call.1} parent=5 // pred_check_branch
        %128 = sbr.rel (%p126) target = $region20
      $region19: #{tpu_custom_call.1} parent=5 // pred_region
        // Predicated region
        $region21: #{tpu_custom_call.1} parent=19 // pred_check
          %p129 = pneg %p43
        $region22: #{tpu_custom_call.1} parent=19 // pred_check_branch
          %131 = sbr.rel (%p129) target = $region24
        $region23: #{tpu_custom_call.1} parent=19 // pred_region
          %s132 = smul.u32 16, %s18
          %p133 = scmp.lt.s32.totalorder %s132, 47
          %s134 = scalar_select %p133, %s132, 47
          %s135 = smul.addr %s134, 8
          %s136 = scalar_lea.vmem %s0, %s135
          %s137 = smul.u32 16, %s18
        $region24: #{tpu_custom_call.1} parent=19 // pred_fallthru
          _
      $region20: #{tpu_custom_call.1} parent=5 // pred_fallthru
        _
      %p138 = scmp.le.s32.totalorder 1, %s11
      %p139 = scmp.lt.s32.totalorder %s11, 4
      %p140 = pnand %p138, %p139
      %p141 = pneg %p140
      // Predicated region
      $region25: #{tpu_custom_call.1} parent=5 // pred_check
        _
      $region26: #{tpu_custom_call.1} parent=5 // pred_check_branch
        %143 = sbr.rel (%p140) target = $region28
      $region27: #{tpu_custom_call.1} parent=5 // pred_region
        %s144 = ssub.s32 %s11, 1
        %s145 = smul.u32 16, %s20
        %p146 = scmp.lt.s32.totalorder %s145, 47
        %s147 = scalar_select %p146, %s145, 47
        %s148 = smul.addr %s147, 8
        %s149 = scalar_lea.vmem %s0, %s148
        %p150 = pneg %p49
        %p151 = pneg %p46
        %p152 = scmp.lt.s32.totalorder %s21, 0
        %s153 = scalar_select %p152, %s21, 0
        %s154 = smul.addr %s153, 8
        %s155 = scalar_lea.vmem %s1, %s154
        %p156 = pneg %p75
        %p157 = pneg %p72
        %p158 = pneg %p103
        %p159 = pneg %p100
        %s160 = sand.u32 %s90, 1
        %s161 = scalar_lea.sflag [#allocation3], %s160
        %s162 = sand.u32 %s90, 1
        %s163 = smul.addr %s162, 128
        %s164 = scalar_lea.vmem [#allocation2], %s163
        %s165 = smul.u32 16, %s20
        %p166 = scmp.lt.s32.totalorder %s165, 47
        %s167 = scalar_select %p166, %s165, 47
        %s168 = smul.addr %s167, 8
        %s169 = scalar_lea.vmem %s0, %s168
        %s170 = smul.u32 16, %s20
        %p171 = scmp.lt.s32.totalorder %s21, 0
        %s172 = scalar_select %p171, %s21, 0
        %s173 = smul.addr %s172, 8
        %s174 = scalar_lea.vmem %s1, %s173
        %s175 = smul.u32 16, %s20
        %v176 = vld [vmem:[%s169] sm:$0xff]
        %v177 = vld [vmem:[%s169 + $0x8] sm:$0xff]
        %v178 = vld [vmem:[%s169 + $0x10] sm:$0xff]
        %v179 = vld [vmem:[%s169 + $0x18] sm:$0xff]
        %v180 = vld [vmem:[%s169 + $0x20] sm:$0xff]
        %v181 = vld [vmem:[%s169 + $0x28] sm:$0xff]
        %v182 = vld [vmem:[%s169 + $0x30] sm:$0xff]
        %v183 = vld [vmem:[%s169 + $0x38] sm:$0xff]
        %v184 = vld [vmem:[%s169 + $0x40] sm:$0xff]
        %v185 = vld [vmem:[%s169 + $0x48] sm:$0xff]
        %v186 = vld [vmem:[%s169 + $0x50] sm:$0xff]
        %v187 = vld [vmem:[%s169 + $0x58] sm:$0xff]
        %v188 = vld [vmem:[%s169 + $0x60] sm:$0xff]
        %v189 = vld [vmem:[%s169 + $0x68] sm:$0xff]
        %v190 = vld [vmem:[%s169 + $0x70] sm:$0xff]
        %v191 = vld [vmem:[%s169 + $0x78] sm:$0xff]
        %v192 = vlaneseq
        %v193 = vand.u32 %v192, 127
        %194 = vset.pattern.permute.xlu0 0
        %195 = vperm.xlu0 %194, %v176
        %v196 = vpop.permute.xlu0 %195
        %197 = vset.pattern.permute.xlu0 0
        %198 = vperm.xlu0 %197, %v177
        %v199 = vpop.permute.xlu0 %198
        %200 = vset.pattern.permute.xlu0 0
        %201 = vperm.xlu0 %200, %v178
        %v202 = vpop.permute.xlu0 %201
        %203 = vset.pattern.permute.xlu0 0
        %204 = vperm.xlu0 %203, %v179
        %v205 = vpop.permute.xlu0 %204
        %206 = vset.pattern.permute.xlu0 0
        %207 = vperm.xlu0 %206, %v180
        %v208 = vpop.permute.xlu0 %207
        %209 = vset.pattern.permute.xlu0 0
        %210 = vperm.xlu0 %209, %v181
        %v211 = vpop.permute.xlu0 %210
        %212 = vset.pattern.permute.xlu0 0
        %213 = vperm.xlu0 %212, %v182
        %v214 = vpop.permute.xlu0 %213
        %215 = vset.pattern.permute.xlu0 0
        %216 = vperm.xlu0 %215, %v183
        %v217 = vpop.permute.xlu0 %216
        %218 = vset.pattern.permute.xlu0 0
        %219 = vperm.xlu0 %218, %v184
        %v220 = vpop.permute.xlu0 %219
        %221 = vset.pattern.permute.xlu0 0
        %222 = vperm.xlu0 %221, %v185
        %v223 = vpop.permute.xlu0 %222
        %224 = vset.pattern.permute.xlu0 0
        %225 = vperm.xlu0 %224, %v186
        %v226 = vpop.permute.xlu0 %225
        %227 = vset.pattern.permute.xlu0 0
        %228 = vperm.xlu0 %227, %v187
        %v229 = vpop.permute.xlu0 %228
        %230 = vset.pattern.permute.xlu0 0
        %231 = vperm.xlu0 %230, %v188
        %v232 = vpop.permute.xlu0 %231
        %233 = vset.pattern.permute.xlu0 0
        %234 = vperm.xlu0 %233, %v189
        %v235 = vpop.permute.xlu0 %234
        %236 = vset.pattern.permute.xlu0 0
        %237 = vperm.xlu0 %236, %v190
        %v238 = vpop.permute.xlu0 %237
        %239 = vset.pattern.permute.xlu0 0
        %240 = vperm.xlu0 %239, %v191
        %v241 = vpop.permute.xlu0 %240
        %vm242 = vcmp.eq.s32.totalorder %v196, %v193
        %vm243 = vcmp.eq.s32.totalorder %v199, %v193
        %vm244 = vcmp.eq.s32.totalorder %v202, %v193
        %vm245 = vcmp.eq.s32.totalorder %v205, %v193
        %vm246 = vcmp.eq.s32.totalorder %v208, %v193
        %vm247 = vcmp.eq.s32.totalorder %v211, %v193
        %vm248 = vcmp.eq.s32.totalorder %v214, %v193
        %vm249 = vcmp.eq.s32.totalorder %v217, %v193
        %vm250 = vcmp.eq.s32.totalorder %v220, %v193
        %vm251 = vcmp.eq.s32.totalorder %v223, %v193
        %vm252 = vcmp.eq.s32.totalorder %v226, %v193
        %vm253 = vcmp.eq.s32.totalorder %v229, %v193
        %vm254 = vcmp.eq.s32.totalorder %v232, %v193
        %vm255 = vcmp.eq.s32.totalorder %v235, %v193
        %vm256 = vcmp.eq.s32.totalorder %v238, %v193
        %vm257 = vcmp.eq.s32.totalorder %v241, %v193
        %258 = vset.pattern.permute.xlu0 1
        %259 = vperm.xlu0 %258, %v176
        %v260 = vpop.permute.xlu0 %259
        %261 = vset.pattern.permute.xlu0 1
        %262 = vperm.xlu0 %261, %v177
        %v263 = vpop.permute.xlu0 %262
        %264 = vset.pattern.permute.xlu0 1
        %265 = vperm.xlu0 %264, %v178
        %v266 = vpop.permute.xlu0 %265
        %267 = vset.pattern.permute.xlu0 1
        %268 = vperm.xlu0 %267, %v179
        %v269 = vpop.permute.xlu0 %268
        %270 = vset.pattern.permute.xlu0 1
        %271 = vperm.xlu0 %270, %v180
        %v272 = vpop.permute.xlu0 %271
        %273 = vset.pattern.permute.xlu0 1
        %274 = vperm.xlu0 %273, %v181
        %v275 = vpop.permute.xlu0 %274
        %276 = vset.pattern.permute.xlu0 1
        %277 = vperm.xlu0 %276, %v182
        %v278 = vpop.permute.xlu0 %277
        %279 = vset.pattern.permute.xlu0 1
        %280 = vperm.xlu0 %279, %v183
        %v281 = vpop.permute.xlu0 %280
        %282 = vset.pattern.permute.xlu0 1
        %283 = vperm.xlu0 %282, %v184
        %v284 = vpop.permute.xlu0 %283
        %285 = vset.pattern.permute.xlu0 1
        %286 = vperm.xlu0 %285, %v185
        %v287 = vpop.permute.xlu0 %286
        %288 = vset.pattern.permute.xlu0 1
        %289 = vperm.xlu0 %288, %v186
        %v290 = vpop.permute.xlu0 %289
        %291 = vset.pattern.permute.xlu0 1
        %292 = vperm.xlu0 %291, %v187
        %v293 = vpop.permute.xlu0 %292
        %294 = vset.pattern.permute.xlu0 1
        %295 = vperm.xlu0 %294, %v188
        %v296 = vpop.permute.xlu0 %295
        %297 = vset.pattern.permute.xlu0 1
        %298 = vperm.xlu0 %297, %v189
        %v299 = vpop.permute.xlu0 %298
        %300 = vset.pattern.permute.xlu0 1
        %301 = vperm.xlu0 %300, %v190
        %v302 = vpop.permute.xlu0 %301
        %303 = vset.pattern.permute.xlu0 1
        %304 = vperm.xlu0 %303, %v191
        %v305 = vpop.permute.xlu0 %304
        %vm306 = vcmp.eq.s32.totalorder %v260, %v193
        %vm307 = vcmp.eq.s32.totalorder %v263, %v193
        %vm308 = vcmp.eq.s32.totalorder %v266, %v193
        %vm309 = vcmp.eq.s32.totalorder %v269, %v193
        %vm310 = vcmp.eq.s32.totalorder %v272, %v193
        %vm311 = vcmp.eq.s32.totalorder %v275, %v193
        %vm312 = vcmp.eq.s32.totalorder %v278, %v193
        %vm313 = vcmp.eq.s32.totalorder %v281, %v193
        %vm314 = vcmp.eq.s32.totalorder %v284, %v193
        %vm315 = vcmp.eq.s32.totalorder %v287, %v193
        %vm316 = vcmp.eq.s32.totalorder %v290, %v193
        %vm317 = vcmp.eq.s32.totalorder %v293, %v193
        %vm318 = vcmp.eq.s32.totalorder %v296, %v193
        %vm319 = vcmp.eq.s32.totalorder %v299, %v193
        %vm320 = vcmp.eq.s32.totalorder %v302, %v193
        %vm321 = vcmp.eq.s32.totalorder %v305, %v193
        %vm322 = vmor %vm242, %vm306
        %vm323 = vmor %vm243, %vm307
        %vm324 = vmor %vm244, %vm308
        %vm325 = vmor %vm245, %vm309
        %vm326 = vmor %vm246, %vm310
        %vm327 = vmor %vm247, %vm311
        %vm328 = vmor %vm248, %vm312
        %vm329 = vmor %vm249, %vm313
        %vm330 = vmor %vm250, %vm314
        %vm331 = vmor %vm251, %vm315
        %vm332 = vmor %vm252, %vm316
        %vm333 = vmor %vm253, %vm317
        %vm334 = vmor %vm254, %vm318
        %vm335 = vmor %vm255, %vm319
        %vm336 = vmor %vm256, %vm320
        %vm337 = vmor %vm257, %vm321
        %338 = vset.pattern.permute.xlu0 2
        %339 = vperm.xlu0 %338, %v176
        %v340 = vpop.permute.xlu0 %339
        %341 = vset.pattern.permute.xlu0 2
        %342 = vperm.xlu0 %341, %v177
        %v343 = vpop.permute.xlu0 %342
        %344 = vset.pattern.permute.xlu0 2
        %345 = vperm.xlu0 %344, %v178
        %v346 = vpop.permute.xlu0 %345
        %347 = vset.pattern.permute.xlu0 2
        %348 = vperm.xlu0 %347, %v179
        %v349 = vpop.permute.xlu0 %348
        %350 = vset.pattern.permute.xlu0 2
        %351 = vperm.xlu0 %350, %v180
        %v352 = vpop.permute.xlu0 %351
        %353 = vset.pattern.permute.xlu0 2
        %354 = vperm.xlu0 %353, %v181
        %v355 = vpop.permute.xlu0 %354
        %356 = vset.pattern.permute.xlu0 2
        %357 = vperm.xlu0 %356, %v182
        %v358 = vpop.permute.xlu0 %357
        %359 = vset.pattern.permute.xlu0 2
        %360 = vperm.xlu0 %359, %v183
        %v361 = vpop.permute.xlu0 %360
        %362 = vset.pattern.permute.xlu0 2
        %363 = vperm.xlu0 %362, %v184
        %v364 = vpop.permute.xlu0 %363
        %365 = vset.pattern.permute.xlu0 2
        %366 = vperm.xlu0 %365, %v185
        %v367 = vpop.permute.xlu0 %366
        %368 = vset.pattern.permute.xlu0 2
        %369 = vperm.xlu0 %368, %v186
        %v370 = vpop.permute.xlu0 %369
        %371 = vset.pattern.permute.xlu0 2
        %372 = vperm.xlu0 %371, %v187
        %v373 = vpop.permute.xlu0 %372
        %374 = vset.pattern.permute.xlu0 2
        %375 = vperm.xlu0 %374, %v188
        %v376 = vpop.permute.xlu0 %375
        %377 = vset.pattern.permute.xlu0 2
        %378 = vperm.xlu0 %377, %v189
        %v379 = vpop.permute.xlu0 %378
        %380 = vset.pattern.permute.xlu0 2
        %381 = vperm.xlu0 %380, %v190
        %v382 = vpop.permute.xlu0 %381
        %383 = vset.pattern.permute.xlu0 2
        %384 = vperm.xlu0 %383, %v191
        %v385 = vpop.permute.xlu0 %384
        %vm386 = vcmp.eq.s32.totalorder %v340, %v193
        %vm387 = vcmp.eq.s32.totalorder %v343, %v193
        %vm388 = vcmp.eq.s32.totalorder %v346, %v193
        %vm389 = vcmp.eq.s32.totalorder %v349, %v193
        %vm390 = vcmp.eq.s32.totalorder %v352, %v193
        %vm391 = vcmp.eq.s32.totalorder %v355, %v193
        %vm392 = vcmp.eq.s32.totalorder %v358, %v193
        %vm393 = vcmp.eq.s32.totalorder %v361, %v193
        %vm394 = vcmp.eq.s32.totalorder %v364, %v193
        %vm395 = vcmp.eq.s32.totalorder %v367, %v193
        %vm396 = vcmp.eq.s32.totalorder %v370, %v193
        %vm397 = vcmp.eq.s32.totalorder %v373, %v193
        %vm398 = vcmp.eq.s32.totalorder %v376, %v193
        %vm399 = vcmp.eq.s32.totalorder %v379, %v193
        %vm400 = vcmp.eq.s32.totalorder %v382, %v193
        %vm401 = vcmp.eq.s32.totalorder %v385, %v193
        %vm402 = vmor %vm322, %vm386
        %vm403 = vmor %vm323, %vm387
        %vm404 = vmor %vm324, %vm388
        %vm405 = vmor %vm325, %vm389
        %vm406 = vmor %vm326, %vm390
        %vm407 = vmor %vm327, %vm391
        %vm408 = vmor %vm328, %vm392
        %vm409 = vmor %vm329, %vm393
        %vm410 = vmor %vm330, %vm394
        %vm411 = vmor %vm331, %vm395
        %vm412 = vmor %vm332, %vm396
        %vm413 = vmor %vm333, %vm397
        %vm414 = vmor %vm334, %vm398
        %vm415 = vmor %vm335, %vm399
        %vm416 = vmor %vm336, %vm400
        %vm417 = vmor %vm337, %vm401
        %v418 = vsel %vm402, 1, 0
        %v419 = vsel %vm403, 1, 0
        %v420 = vsel %vm404, 1, 0
        %v421 = vsel %vm405, 1, 0
        %v422 = vsel %vm406, 1, 0
        %v423 = vsel %vm407, 1, 0
        %v424 = vsel %vm408, 1, 0
        %v425 = vsel %vm409, 1, 0
        %v426 = vsel %vm410, 1, 0
        %v427 = vsel %vm411, 1, 0
        %v428 = vsel %vm412, 1, 0
        %v429 = vsel %vm413, 1, 0
        %v430 = vsel %vm414, 1, 0
        %v431 = vsel %vm415, 1, 0
        %v432 = vsel %vm416, 1, 0
        %v433 = vsel %vm417, 1, 0
        %v434 = vcvt.s32.f32 %v418
        %v435 = vcvt.s32.f32 %v419
        %v436 = vcvt.s32.f32 %v420
        %v437 = vcvt.s32.f32 %v421
        %v438 = vcvt.s32.f32 %v422
        %v439 = vcvt.s32.f32 %v423
        %v440 = vcvt.s32.f32 %v424
        %v441 = vcvt.s32.f32 %v425
        %v442 = vcvt.s32.f32 %v426
        %v443 = vcvt.s32.f32 %v427
        %v444 = vcvt.s32.f32 %v428
        %v445 = vcvt.s32.f32 %v429
        %v446 = vcvt.s32.f32 %v430
        %v447 = vcvt.s32.f32 %v431
        %v448 = vcvt.s32.f32 %v432
        %v449 = vcvt.s32.f32 %v433
        %v450 = vld [vmem:[%s174] sm:$0xff]
        %v451 = vld [vmem:[%s174 + $0x8] sm:$0xff]
        %v452 = vld [vmem:[%s174 + $0x10] sm:$0xff]
        %v453 = vld [vmem:[%s174 + $0x18] sm:$0xff]
        %v454 = vld [vmem:[%s174 + $0x20] sm:$0xff]
        %v455 = vld [vmem:[%s174 + $0x28] sm:$0xff]
        %v456 = vld [vmem:[%s174 + $0x30] sm:$0xff]
        %v457 = vld [vmem:[%s174 + $0x38] sm:$0xff]
        %v458 = vld [vmem:[%s174 + $0x40] sm:$0xff]
        %v459 = vld [vmem:[%s174 + $0x48] sm:$0xff]
        %v460 = vld [vmem:[%s174 + $0x50] sm:$0xff]
        %v461 = vld [vmem:[%s174 + $0x58] sm:$0xff]
        %v462 = vld [vmem:[%s174 + $0x60] sm:$0xff]
        %v463 = vld [vmem:[%s174 + $0x68] sm:$0xff]
        %v464 = vld [vmem:[%s174 + $0x70] sm:$0xff]
        %v465 = vld [vmem:[%s174 + $0x78] sm:$0xff]
        %466 = vmatprep.subr.mxu0 0.0
        %467 = vmatpush1.msra.mxu0 %v465
        %468 = vmatprep.subr.mxu0 0.0
        %469 = vmatpush1.msra.mxu0 %v464
        %470 = vmatprep.subr.mxu0 0.0
        %471 = vmatpush1.msra.mxu0 %v463
        %472 = vmatprep.subr.mxu0 0.0
        %473 = vmatpush1.msra.mxu0 %v462
        %474 = vmatprep.subr.mxu0 0.0
        %475 = vmatpush1.msra.mxu0 %v461
        %476 = vmatprep.subr.mxu0 0.0
        %477 = vmatpush1.msra.mxu0 %v460
        %478 = vmatprep.subr.mxu0 0.0
        %479 = vmatpush1.msra.mxu0 %v459
        %480 = vmatprep.subr.mxu0 0.0
        %481 = vmatpush1.msra.mxu0 %v458
        %482 = vmatprep.subr.mxu0 0.0
        %483 = vmatpush1.msra.mxu0 %v457
        %484 = vmatprep.subr.mxu0 0.0
        %485 = vmatpush1.msra.mxu0 %v456
        %486 = vmatprep.subr.mxu0 0.0
        %487 = vmatpush1.msra.mxu0 %v455
        %488 = vmatprep.subr.mxu0 0.0
        %489 = vmatpush1.msra.mxu0 %v454
        %490 = vmatprep.subr.mxu0 0.0
        %491 = vmatpush1.msra.mxu0 %v453
        %492 = vmatprep.subr.mxu0 0.0
        %493 = vmatpush1.msra.mxu0 %v452
        %494 = vmatprep.subr.mxu0 0.0
        %495 = vmatpush1.msra.mxu0 %v451
        %496 = vmatprep.subr.mxu0 0.0
        %497 = vmatpush1.msra.mxu0 %v450
        %498 = vmatprep.subr.mxu0 0.0
        %499 = vmatpush2.msra.mxu0 0.0
        %500 = vmatprep.subr.mxu0 0.0
        %501 = vmatpush2.msra.mxu0 0.0
        %502 = vmatprep.subr.mxu0 0.0
        %503 = vmatpush2.msra.mxu0 0.0
        %504 = vmatprep.subr.mxu0 0.0
        %505 = vmatpush2.msra.mxu0 0.0
        %506 = vmatprep.subr.mxu0 0.0
        %507 = vmatpush2.msra.mxu0 0.0
        %508 = vmatprep.subr.mxu0 0.0
        %509 = vmatpush2.msra.mxu0 0.0
        %510 = vmatprep.subr.mxu0 0.0
        %511 = vmatpush2.msra.mxu0 0.0
        %512 = vmatprep.subr.mxu0 0.0
        %513 = vmatpush2.msra.mxu0 0.0
        %514 = vmatprep.subr.mxu0 0.0
        %515 = vmatpush2.msra.mxu0 0.0
        %516 = vmatprep.subr.mxu0 0.0
        %517 = vmatpush2.msra.mxu0 0.0
        %518 = vmatprep.subr.mxu0 0.0
        %519 = vmatpush2.msra.mxu0 0.0
        %520 = vmatprep.subr.mxu0 0.0
        %521 = vmatpush2.msra.mxu0 0.0
        %522 = vmatprep.subr.mxu0 0.0
        %523 = vmatpush2.msra.mxu0 0.0
        %524 = vmatprep.subr.mxu0 0.0
        %525 = vmatpush2.msra.mxu0 0.0
        %526 = vmatprep.subr.mxu0 0.0
        %527 = vmatpush2.msra.mxu0 0.0
        %528 = vmatprep.subr.mxu0 0.0
        %529 = vmatpush2.msra.mxu0 0.0
        %530 = vmatprep.mubr.f32.mxu0 0.0
        %531 = vmatmul.mubr.f32.gmra.mxu0 %v434
        %v532 = vpop.f32.mrf.mxu0
        %v533 = vadd.f32 0.0, %v532
        %v534 = vpop.f32.mrf.mxu0
        %535 = vmatprep.mubr.f32.mxu0 0.0
        %536 = vmatmul.mubr.f32.gmra.mxu0 %v435
        %v537 = vpop.f32.mrf.mxu0
        %v538 = vadd.f32 0.0, %v537
        %v539 = vpop.f32.mrf.mxu0
        %540 = vmatprep.mubr.f32.mxu0 0.0
        %541 = vmatmul.mubr.f32.gmra.mxu0 %v436
        %v542 = vpop.f32.mrf.mxu0
        %v543 = vadd.f32 0.0, %v542
        %v544 = vpop.f32.mrf.mxu0
        %545 = vmatprep.mubr.f32.mxu0 0.0
        %546 = vmatmul.mubr.f32.gmra.mxu0 %v437
        %v547 = vpop.f32.mrf.mxu0
        %v548 = vadd.f32 0.0, %v547
        %v549 = vpop.f32.mrf.mxu0
        %550 = vmatprep.mubr.f32.mxu0 0.0
        %551 = vmatmul.mubr.f32.gmra.mxu0 %v438
        %v552 = vpop.f32.mrf.mxu0
        %v553 = vadd.f32 0.0, %v552
        %v554 = vpop.f32.mrf.mxu0
        %555 = vmatprep.mubr.f32.mxu0 0.0
        %556 = vmatmul.mubr.f32.gmra.mxu0 %v439
        %v557 = vpop.f32.mrf.mxu0
        %v558 = vadd.f32 0.0, %v557
        %v559 = vpop.f32.mrf.mxu0
        %560 = vmatprep.mubr.f32.mxu0 0.0
        %561 = vmatmul.mubr.f32.gmra.mxu0 %v440
        %v562 = vpop.f32.mrf.mxu0
        %v563 = vadd.f32 0.0, %v562
        %v564 = vpop.f32.mrf.mxu0
        %565 = vmatprep.mubr.f32.mxu0 0.0
        %566 = vmatmul.mubr.f32.gmra.mxu0 %v441
        %v567 = vpop.f32.mrf.mxu0
        %v568 = vadd.f32 0.0, %v567
        %v569 = vpop.f32.mrf.mxu0
        %570 = vmatprep.mubr.f32.mxu0 0.0
        %571 = vmatmul.mubr.f32.gmra.mxu0 %v442
        %v572 = vpop.f32.mrf.mxu0
        %v573 = vadd.f32 0.0, %v572
        %v574 = vpop.f32.mrf.mxu0
        %575 = vmatprep.mubr.f32.mxu0 0.0
        %576 = vmatmul.mubr.f32.gmra.mxu0 %v443
        %v577 = vpop.f32.mrf.mxu0
        %v578 = vadd.f32 0.0, %v577
        %v579 = vpop.f32.mrf.mxu0
        %580 = vmatprep.mubr.f32.mxu0 0.0
        %581 = vmatmul.mubr.f32.gmra.mxu0 %v444
        %v582 = vpop.f32.mrf.mxu0
        %v583 = vadd.f32 0.0, %v582
        %v584 = vpop.f32.mrf.mxu0
        %585 = vmatprep.mubr.f32.mxu0 0.0
        %586 = vmatmul.mubr.f32.gmra.mxu0 %v445
        %v587 = vpop.f32.mrf.mxu0
        %v588 = vadd.f32 0.0, %v587
        %v589 = vpop.f32.mrf.mxu0
        %590 = vmatprep.mubr.f32.mxu0 0.0
        %591 = vmatmul.mubr.f32.gmra.mxu0 %v446
        %v592 = vpop.f32.mrf.mxu0
        %v593 = vadd.f32 0.0, %v592
        %v594 = vpop.f32.mrf.mxu0
        %595 = vmatprep.mubr.f32.mxu0 0.0
        %596 = vmatmul.mubr.f32.gmra.mxu0 %v447
        %v597 = vpop.f32.mrf.mxu0
        %v598 = vadd.f32 0.0, %v597
        %v599 = vpop.f32.mrf.mxu0
        %600 = vmatprep.mubr.f32.mxu0 0.0
        %601 = vmatmul.mubr.f32.gmra.mxu0 %v448
        %v602 = vpop.f32.mrf.mxu0
        %v603 = vadd.f32 0.0, %v602
        %v604 = vpop.f32.mrf.mxu0
        %605 = vmatprep.mubr.f32.mxu0 0.0
        %606 = vmatmul.mubr.f32.gmra.mxu0 %v449
        %v607 = vpop.f32.mrf.mxu0
        %v608 = vadd.f32 0.0, %v607
        %v609 = vpop.f32.mrf.mxu0
        %610 = vdwg.mxu0
        %611 = vst [vmem:[%s164] sm:$0xff] %v533
        %612 = vst [vmem:[%s164 + $0x8] sm:$0xff] %v538
        %613 = vst [vmem:[%s164 + $0x10] sm:$0xff] %v543
        %614 = vst [vmem:[%s164 + $0x18] sm:$0xff] %v548
        %615 = vst [vmem:[%s164 + $0x20] sm:$0xff] %v553
        %616 = vst [vmem:[%s164 + $0x28] sm:$0xff] %v558
        %617 = vst [vmem:[%s164 + $0x30] sm:$0xff] %v563
        %618 = vst [vmem:[%s164 + $0x38] sm:$0xff] %v568
        %619 = vst [vmem:[%s164 + $0x40] sm:$0xff] %v573
        %620 = vst [vmem:[%s164 + $0x48] sm:$0xff] %v578
        %621 = vst [vmem:[%s164 + $0x50] sm:$0xff] %v583
        %622 = vst [vmem:[%s164 + $0x58] sm:$0xff] %v588
        %623 = vst [vmem:[%s164 + $0x60] sm:$0xff] %v593
        %624 = vst [vmem:[%s164 + $0x68] sm:$0xff] %v598
        %625 = vst [vmem:[%s164 + $0x70] sm:$0xff] %v603
        %626 = vst [vmem:[%s164 + $0x78] sm:$0xff] %v608
        %s627 = sand.u32 %s90, 1
        %s628 = scalar_lea.sflag [#allocation3], %s627
        %s629 = sand.u32 %s90, 1
        %s630 = smul.addr %s629, 128
        %s631 = scalar_lea.vmem [#allocation2], %s630
        // Predicated region
        $region29: #{tpu_custom_call.1} parent=27 // pred_check
          %p632 = pneg %p100
        $region30: #{tpu_custom_call.1} parent=27 // pred_check_branch
          %634 = sbr.rel (%p632) target = $region32
        $region31: #{tpu_custom_call.1} parent=27 // pred_region
          %s635 = smul.u32 16, %s20
          %s637 = ssub.s32 2048, 2048
          %638 = vsyncadd %s628, %s637
          %s639 = sadd.s32 %s21, %s635
          %s640 = smul.addr %s639, 128
          %s641 = scalar_lea.hbm %s2, %s640
          %s642 = sshll.u32 %s631, 4
          %s643 = int_to_ptr.vmem [resolvable:$true] %s642
          %648 = dma.vmem_to_hbm [thread:$0]  %s643, 2048, %s641, %s628, 128, 128, 8
        $region32: #{tpu_custom_call.1} parent=27 // pred_fallthru
          _
      $region28: #{tpu_custom_call.1} parent=5 // pred_fallthru
        _
      %p649 = scmp.le.s32.totalorder 2, %s11
      // Predicated region
      $region33: #{tpu_custom_call.1} parent=5 // pred_check
        %p650 = pneg %p649
      $region34: #{tpu_custom_call.1} parent=5 // pred_check_branch
        %652 = sbr.rel (%p650) target = $region36
      $region35: #{tpu_custom_call.1} parent=5 // pred_region
        %s653 = ssub.s32 %s11, 2
        // Predicated region
        $region37: #{tpu_custom_call.1} parent=35 // pred_check
          %p654 = pneg %p106
        $region38: #{tpu_custom_call.1} parent=35 // pred_check_branch
          %656 = sbr.rel (%p654) target = $region40
        $region39: #{tpu_custom_call.1} parent=35 // pred_region
          %s657 = sand.u32 %s91, 1
          %s658 = scalar_lea.sflag [#allocation3], %s657
          %s659 = sand.u32 %s91, 1
          %s660 = smul.addr %s659, 128
          %s661 = scalar_lea.vmem [#allocation2], %s660
          %662 = dma.done %s658, 2048
        $region40: #{tpu_custom_call.1} parent=35 // pred_fallthru
          _
      $region36: #{tpu_custom_call.1} parent=5 // pred_fallthru
        _
    $region6: #{tpu_custom_call.1} parent=1 // loop_footer
      %s15 = sadd.s32 1, %s11
    $region7: #{tpu_custom_call.1} parent=1 // loop_footer_branch
      %10 = sbr.rel target = $region3
    $region8: #{tpu_custom_call.1} parent=1 // loop_exit
      _
    %663 = vsyncpa [#allocation3], 1
    %s664 = scalar_lea.sflag [#allocation3], 1
    %665 = vsyncpa %s664, 1

</llo_original>
